<compile_context>
chip_gen: v5e
topology: v5e:2x2
jax: 0.10.0
libtpu: 0.0.40
codegen_flags: <defaults>
</compile_context>

<pallas_src>
import functools

import jax
import jax.numpy as jnp
from jax.experimental import pallas as pl
from jax.experimental.pallas import tpu as pltpu

EPS = 1e-5


def _round_up(x, m):
    return (x + m - 1) // m * m


def prenorm_kernel(x_ref, gamma_ref, beta_ref, w_ref, bias_ref, o_ref,
                   normed_ref):
    # LayerNorm + bf16 cast computed once per row tile (j == 0) and carried
    # across the N-tile (j) axis in a VMEM scratch. Statistics use the true
    # d_model (no padded columns exist), two-pass for accuracy, all in f32.
    @pl.when(pl.program_id(1) == 0)
    def _():
        x = x_ref[...].astype(jnp.float32)
        mean = jnp.mean(x, axis=-1, keepdims=True)
        xc = x - mean
        var = jnp.mean(xc * xc, axis=-1, keepdims=True)
        inv = jax.lax.rsqrt(var + EPS)
        normed = xc * inv * gamma_ref[...].astype(jnp.float32) \
                 + beta_ref[...].astype(jnp.float32)
        normed_ref[...] = normed.astype(normed_ref.dtype)

    # fn: Linear(d_model -> d_model), one N tile. MXU fed bf16, f32 accum.
    y = jnp.dot(normed_ref[...], w_ref[...],
                preferred_element_type=jnp.float32)
    y = y + bias_ref[...].astype(jnp.float32)
    o_ref[...] = y.astype(o_ref.dtype)


@functools.partial(jax.jit, static_argnames=("tm", "tn"))
def prenorm(x, gamma, beta, w, bias, *, tm=None, tn=None):
    B, S, D = x.shape
    M = B * S

    # No padding: reshape only (free for contiguous layouts).
    x2 = x.reshape(M, D)
    g2 = gamma.reshape(1, D)
    b2 = beta.reshape(1, D)
    w2 = w.astype(jnp.bfloat16)
    bias2 = bias.reshape(1, D)

    itemsize = x.dtype.itemsize

    # ---- generation-aware VMEM budget ----
    try:
        vmem_cap = int(pltpu.get_tpu_info().vmem_capacity_bytes)
    except Exception:
        vmem_cap = 64 * 1024 * 1024          # v7x-safe fallback
    vmem_budget = int(vmem_cap * 0.75)

    # ---- N (output-feature) tiling: resident weight when it fits ----
    if tn is None:
        tn = D if (2 * D * D) <= 16 * 1024 * 1024 else 512
    tn = min(tn, D)

    # ---- M (row) tiling ----
    if tm is None:
        tm = 512
    tm = min(tm, _round_up(M, 8))
    # keep several i steps so megacore (v7x: 2 TCs) has work for both cores
    while tm > 256 and pl.cdiv(M, tm) < 8 and M > tm:
        tm //= 2

    def footprint(tm_, tn_):
        return (2 * tm_ * D * itemsize       # x tile (double-buffered)
                + 2 * D * tn_ * 2            # weight N-tile (bf16)
                + 2 * tm_ * tn_ * itemsize   # output tile
                + tm_ * D * 2                # normed scratch (bf16)
                + 4 * tm_ * D * 4            # LayerNorm f32 temporaries
                + 6 * D * 4)                 # gamma / beta / bias

    while footprint(tm, tn) > vmem_budget and tm > 8:
        tm = max(8, (tm // 2) // 8 * 8)
    while footprint(tm, tn) > vmem_budget and tn > 256:
        tn = max(256, _round_up(tn // 2, 128))

    n_i = pl.cdiv(M, tm)
    n_j = pl.cdiv(D, tn)
    vmem_limit = int(min(vmem_budget,
                         max(32 * 1024 * 1024, int(footprint(tm, tn) * 1.5))))

    cost = pl.CostEstimate(
        flops=2 * M * D * D,
        transcendentals=M,
        bytes_accessed=(M * D * itemsize        # x read
                        + D * D * 2             # weight read (resident case)
                        + M * D * itemsize      # output write
                        + 3 * D * 4))           # gamma / beta / bias

    out = pl.pallas_call(
        prenorm_kernel,
        out_shape=jax.ShapeDtypeStruct((M, D), x.dtype),
        grid_spec=pltpu.PrefetchScalarGridSpec(
            num_scalar_prefetch=0,
            grid=(n_i, n_j),
            in_specs=[
                pl.BlockSpec((tm, D), lambda i, j: (i, 0)),   # x rows (resident over j)
                pl.BlockSpec((1, D), lambda i, j: (0, 0)),    # gamma (resident)
                pl.BlockSpec((1, D), lambda i, j: (0, 0)),    # beta  (resident)
                pl.BlockSpec((D, tn), lambda i, j: (0, j)),   # weight N-tile (bf16)
                pl.BlockSpec((1, tn), lambda i, j: (0, j)),   # bias N-tile
            ],
            out_specs=pl.BlockSpec((tm, tn), lambda i, j: (i, j)),
            scratch_shapes=[pltpu.VMEM((tm, D), jnp.bfloat16)],  # normed (carried over j)
        ),
        compiler_params=pltpu.CompilerParams(
            # j carries the normed scratch -> must be "arbitrary";
            # i is independent -> "parallel" (megacore sharding on v7x).
            dimension_semantics=("parallel", "arbitrary"),
            vmem_limit_bytes=vmem_limit,
        ),
        cost_estimate=cost,
    )(x2, g2, b2, w2, bias2)

    return out.reshape(B, S, D)


def prenorm_reference(x, gamma, beta, w, bias):
    xf = x.astype(jnp.float32)
    mean = jnp.mean(xf, axis=-1, keepdims=True)
    var = jnp.mean((xf - mean) ** 2, axis=-1, keepdims=True)
    normed = (xf - mean) * jax.lax.rsqrt(var + EPS) * gamma + beta
    return (normed @ w + bias).astype(x.dtype)


if __name__ == "__main__":
    B, S, D = 2, 8, 32

    key = jax.random.PRNGKey(0)
    kx, kw, kb = jax.random.split(key, 3)

    x = jax.random.normal(kx, (B, S, D), dtype=jnp.float32)

    # nn.LayerNorm(d_model) defaults: weight=1, bias=0
    gamma = jnp.ones((D,), dtype=jnp.float32)
    beta = jnp.zeros((D,), dtype=jnp.float32)

    # deterministic init for the wrapped fn (Linear(d_model, d_model))
    w = jax.random.normal(kw, (D, D), dtype=jnp.float32) * (1.0 / jnp.sqrt(D))
    bias = jax.random.normal(kb, (D,), dtype=jnp.float32) * 0.01

    out = prenorm(x, gamma, beta, w, bias)
    jax.block_until_ready(out)

    ref = prenorm_reference(x, gamma, beta, w, bias)
    assert out.shape == (B, S, D)
    # GEMM inputs are bf16 (f32 accumulation) -> slightly looser tolerance.
    err = float(jnp.max(jnp.abs(out - ref)))
    assert jnp.allclose(out, ref, atol=5e-2, rtol=5e-2), f"max abs err {err}"

    print("KERNEL_OK")
</pallas_src>

<mosaic_0001>
module attributes {stable_mosaic.version = 11 : i64} {
  func.func @prenorm_kernel(%arg0: i32, %arg1: i32, %arg2: memref<16x32xf32, #tpu.memory_space<vmem>>, %arg3: memref<1x32xf32, #tpu.memory_space<vmem>>, %arg4: memref<1x32xf32, #tpu.memory_space<vmem>>, %arg5: memref<32x32xbf16, #tpu.memory_space<vmem>>, %arg6: memref<1x32xf32, #tpu.memory_space<vmem>>, %arg7: memref<16x32xf32, #tpu.memory_space<vmem>>, %arg8: memref<16x32xbf16, #tpu.memory_space<vmem>>) attributes {dimension_semantics = [#tpu.dimension_semantics<parallel>, #tpu.dimension_semantics<arbitrary>], iteration_bounds = array<i64: 1, 1>, scalar_prefetch = 0 : i64, scratch_operands = 1 : i64, tpu.core_type = #tpu.core_type<tc>, window_params = [{transform_indices = @transform_0, window_bounds = array<i64: 16, 32>}, {pipeline_mode = #tpu.pipeline_mode<synchronous>, transform_indices = @transform_1, window_bounds = array<i64: 1, 32>}, {pipeline_mode = #tpu.pipeline_mode<synchronous>, transform_indices = @transform_2, window_bounds = array<i64: 1, 32>}, {transform_indices = @transform_3, window_bounds = array<i64: 32, 32>}, {transform_indices = @transform_4, window_bounds = array<i64: 1, 32>}, {transform_indices = @transform_5, window_bounds = array<i64: 16, 32>}]} {
    %c0_i32 = arith.constant 0 : i32
    %0 = arith.cmpi eq, %arg1, %c0_i32 : i32
    %1 = arith.extui %0 : i1 to i32
    %c0_i32_0 = arith.constant 0 : i32
    %2 = arith.cmpi ne, %1, %c0_i32_0 : i32
    scf.if %2 {
      %c0_8 = arith.constant 0 : index
      %c0_9 = arith.constant 0 : index
      %10 = vector.load %arg2[%c0_8, %c0_9] : memref<16x32xf32, #tpu.memory_space<vmem>>, vector<16x32xf32>
      %cst_10 = arith.constant dense<0.000000e+00> : vector<16xf32>
      %11 = vector.multi_reduction <add>, %10, %cst_10 [1] : vector<16x32xf32> to vector<16xf32>
      %12 = vector.shape_cast %11 : vector<16xf32> to vector<16x1xf32>
      %cst_11 = arith.constant 3.200000e+01 : f32
      %13 = vector.broadcast %cst_11 : f32 to vector<16x1xf32>
      %14 = arith.divf %12, %13 : vector<16x1xf32>
      %15 = vector.broadcast %14 : vector<16x1xf32> to vector<16x32xf32>
      %16 = arith.subf %10, %15 : vector<16x32xf32>
      %17 = arith.mulf %16, %16 : vector<16x32xf32>
      %cst_12 = arith.constant dense<0.000000e+00> : vector<16xf32>
      %18 = vector.multi_reduction <add>, %17, %cst_12 [1] : vector<16x32xf32> to vector<16xf32>
      %19 = vector.shape_cast %18 : vector<16xf32> to vector<16x1xf32>
      %cst_13 = arith.constant 3.200000e+01 : f32
      %20 = vector.broadcast %cst_13 : f32 to vector<16x1xf32>
      %21 = arith.divf %19, %20 : vector<16x1xf32>
      %cst_14 = arith.constant 9.99999974E-6 : f32
      %22 = vector.broadcast %cst_14 : f32 to vector<16x1xf32>
      %23 = arith.addf %21, %22 : vector<16x1xf32>
      %24 = math.rsqrt %23 : vector<16x1xf32>
      %25 = vector.broadcast %24 : vector<16x1xf32> to vector<16x32xf32>
      %26 = arith.mulf %16, %25 : vector<16x32xf32>
      %c0_15 = arith.constant 0 : index
      %c0_16 = arith.constant 0 : index
      %27 = vector.load %arg3[%c0_15, %c0_16] : memref<1x32xf32, #tpu.memory_space<vmem>>, vector<1x32xf32>
      %28 = vector.broadcast %27 : vector<1x32xf32> to vector<16x32xf32>
      %29 = arith.mulf %26, %28 : vector<16x32xf32>
      %c0_17 = arith.constant 0 : index
      %c0_18 = arith.constant 0 : index
      %30 = vector.load %arg4[%c0_17, %c0_18] : memref<1x32xf32, #tpu.memory_space<vmem>>, vector<1x32xf32>
      %31 = vector.broadcast %30 : vector<1x32xf32> to vector<16x32xf32>
      %32 = arith.addf %29, %31 : vector<16x32xf32>
      %33 = arith.truncf %32 : vector<16x32xf32> to vector<16x32xbf16>
      %c0_19 = arith.constant 0 : index
      %c0_20 = arith.constant 0 : index
      %34 = vector.load %arg8[%c0_19, %c0_20] : memref<16x32xbf16, #tpu.memory_space<vmem>>, vector<16x32xbf16>
      tpu.vector_store %arg8[%c0_19, %c0_20], %33 {strides = array<i32>} : memref<16x32xbf16, #tpu.memory_space<vmem>>, vector<16x32xbf16>,
    } else {
    }
    %c0 = arith.constant 0 : index
    %c0_1 = arith.constant 0 : index
    %3 = vector.load %arg8[%c0, %c0_1] : memref<16x32xbf16, #tpu.memory_space<vmem>>, vector<16x32xbf16>
    %c0_2 = arith.constant 0 : index
    %c0_3 = arith.constant 0 : index
    %4 = vector.load %arg5[%c0_2, %c0_3] : memref<32x32xbf16, #tpu.memory_space<vmem>>, vector<32x32xbf16>
    %cst = arith.constant dense<0.000000e+00> : vector<16x32xf32>
    %5 = tpu.matmul %3, %4, %cst {dimension_numbers = #tpu.dot_dimension_numbers<[1], [0], [0], [1], [0, 0, 1, 1], [], []>} : vector<16x32xbf16>, vector<32x32xbf16>, vector<16x32xf32> -> vector<16x32xf32>
    %c0_4 = arith.constant 0 : index
    %c0_5 = arith.constant 0 : index
    %6 = vector.load %arg6[%c0_4, %c0_5] : memref<1x32xf32, #tpu.memory_space<vmem>>, vector<1x32xf32>
    %7 = vector.broadcast %6 : vector<1x32xf32> to vector<16x32xf32>
    %8 = arith.addf %5, %7 : vector<16x32xf32>
    %c0_6 = arith.constant 0 : index
    %c0_7 = arith.constant 0 : index
    %9 = vector.load %arg7[%c0_6, %c0_7] : memref<16x32xf32, #tpu.memory_space<vmem>>, vector<16x32xf32>
    tpu.vector_store %arg7[%c0_6, %c0_7], %8 {strides = array<i32>} : memref<16x32xf32, #tpu.memory_space<vmem>>, vector<16x32xf32>,
    return
  }
  func.func @transform_0(%arg0: i32, %arg1: i32) -> (i32, i32) {
    %c0_i32 = arith.constant 0 : i32
    %c0_i32_0 = arith.constant 0 : i32
    return %arg0, %c0_i32 : i32, i32
  }
  func.func @transform_1(%arg0: i32, %arg1: i32) -> (i32, i32) {
    %c0_i32 = arith.constant 0 : i32
    %c0_i32_0 = arith.constant 0 : i32
    %c0_i32_1 = arith.constant 0 : i32
    return %c0_i32, %c0_i32_0 : i32, i32
  }
  func.func @transform_2(%arg0: i32, %arg1: i32) -> (i32, i32) {
    %c0_i32 = arith.constant 0 : i32
    %c0_i32_0 = arith.constant 0 : i32
    %c0_i32_1 = arith.constant 0 : i32
    return %c0_i32, %c0_i32_0 : i32, i32
  }
  func.func @transform_3(%arg0: i32, %arg1: i32) -> (i32, i32) {
    %c0_i32 = arith.constant 0 : i32
    %c0_i32_0 = arith.constant 0 : i32
    return %c0_i32, %arg1 : i32, i32
  }
  func.func @transform_4(%arg0: i32, %arg1: i32) -> (i32, i32) {
    %c0_i32 = arith.constant 0 : i32
    %c0_i32_0 = arith.constant 0 : i32
    return %c0_i32, %arg1 : i32, i32
  }
  func.func @transform_5(%arg0: i32, %arg1: i32) -> (i32, i32) {
    %c0_i32 = arith.constant 0 : i32
    return %arg0, %arg1 : i32, i32
  }
}

</mosaic_0001>

<llo_original>
// kernel: prenorm.1
$region0: #{prenorm.1}
  #allocation0 [shape = 'u32[]', space=smem, size = 0x4, offset = 0x4, fixed_abs, tag = 'smem constant byte address 0x4 - core index']
  #allocation1 [shape = 'u32[72,128]{1,0:T(1,128)}', space=vmem, size = 0x9000, scoped, tag = 'internal scratch']
  #allocation2 [shape = 'bf16[16,32]{1,0:T(8,128)(2,1)}', space=vmem, size = 0x1000, scoped, tag = 'scratch operand']
  %s0 = inlined_call_operand.vmem [shape: f32[16,32], index: 0, kind: input, shape index: {}]
  %s1 = inlined_call_operand.vmem [shape: f32[1,32], index: 1, kind: input, shape index: {}]
  %s2 = inlined_call_operand.vmem [shape: f32[1,32], index: 2, kind: input, shape index: {}]
  %s3 = inlined_call_operand.vmem [shape: bf16[32,32], index: 3, kind: input, shape index: {}]
  %s4 = inlined_call_operand.vmem [shape: f32[1,32], index: 4, kind: input, shape index: {}]
  %s5 = inlined_call_operand.hbm [shape: f32[16,32], index: 5, kind: output, shape index: {}]
  %s6 = sld [smem:[#allocation0]]
  $region34: #{prenorm.1} parent=0
    _
  %s8 = ssub.s32 1, %s6
  %s9 = scalar_select 0, %s8, %s6
  $region1: #{prenorm.1} parent=0
    #allocation3 [shape = 'u8[8192]{0}', space=vmem, size = 0x2000, scoped, tag = 'output window, operand 0, single buffered']
    #allocation4 [shape = 's32[1]{0}', space=sflag, size = 0x4, scoped, tag = 'scoped memory for prenorm.1']
    %10 = vsyncpa [#allocation4], 0
    // Predicated region
    $region2: #{prenorm.1} parent=1 // pred_check
      _
    $region3: #{prenorm.1} parent=1 // pred_check_branch
      %12 = sbr.rel (0) target = $region5
    $region4: #{prenorm.1} parent=1 // pred_region
      _
    $region5: #{prenorm.1} parent=1 // pred_fallthru
      _
    // Predicated region
    $region6: #{prenorm.1} parent=1 // pred_check
      _
    $region7: #{prenorm.1} parent=1 // pred_check_branch
      %14 = sbr.rel (0) target = $region9
    $region8: #{prenorm.1} parent=1 // pred_region
      _
    $region9: #{prenorm.1} parent=1 // pred_fallthru
      _
    // Predicated region
    $region10: #{prenorm.1} parent=1 // pred_check
      _
    $region11: #{prenorm.1} parent=1 // pred_check_branch
      %16 = sbr.rel (0) target = $region13
    $region12: #{prenorm.1} parent=1 // pred_region
      _
    $region13: #{prenorm.1} parent=1 // pred_fallthru
      _
    // Predicated region
    $region14: #{prenorm.1} parent=1 // pred_check
      _
    $region15: #{prenorm.1} parent=1 // pred_check_branch
      %18 = sbr.rel (0) target = $region17
    $region16: #{prenorm.1} parent=1 // pred_region
      _
    $region17: #{prenorm.1} parent=1 // pred_fallthru
      _
    // Predicated region
    $region18: #{prenorm.1} parent=1 // pred_check
      _
    $region19: #{prenorm.1} parent=1 // pred_check_branch
      %20 = sbr.rel (0) target = $region21
    $region20: #{prenorm.1} parent=1 // pred_region
      _
    $region21: #{prenorm.1} parent=1 // pred_fallthru
      _
    %p22 = scmp.eq.s32.totalorder 0, 0
    // Predicated region
    $region22: #{prenorm.1} parent=1 // pred_check
      %p23 = pneg %p22
    $region23: #{prenorm.1} parent=1 // pred_check_branch
      %25 = sbr.rel (%p23) target = $region25
    $region24: #{prenorm.1} parent=1 // pred_region
      %v26 = vld [vmem:[%s0] sm:$0xff]
      %v27 = vld [vmem:[%s0 + $0x8] sm:$0xff]
      %vm28 = vcmask 261120
      %v29 = vsel %vm28, %v26, 0.0
      %30 = vadd.xlane.f32.xlu0 %v29
      %v31 = vpop.xlane.xlu0 %30
      %v32 = vsel %vm28, %v27, 0.0
      %33 = vadd.xlane.f32.xlu0 %v32
      %v34 = vpop.xlane.xlu0 %33
      %v35 = vrcp.pop 32.0
      %v36 = vmul.f32 32.0, %v35
      %v37 = vsub.f32 1.0, %v36
      %v38 = vmul.f32 %v35, %v37
      %v39 = vadd.f32 %v35, %v38
      %vm40 = vweird.f32 %v35
      %v41 = vsel %vm40, %v35, %v39
      %v42 = vmul.f32 %v31, %v41
      %v43 = vmul.f32 %v34, %v41
      %v44 = vsub.f32 %v26, %v42
      %v45 = vsub.f32 %v27, %v43
      %v46 = vmul.f32 %v44, %v44
      %v47 = vmul.f32 %v45, %v45
      %v48 = vsel %vm28, %v46, 0.0
      %49 = vadd.xlane.f32.xlu0 %v48
      %v50 = vpop.xlane.xlu0 %49
      %v51 = vsel %vm28, %v47, 0.0
      %52 = vadd.xlane.f32.xlu0 %v51
      %v53 = vpop.xlane.xlu0 %52
      %v54 = vmul.f32 %v50, %v41
      %v55 = vmul.f32 %v53, %v41
      %v56 = vadd.f32 %v54, 1e-05
      %v57 = vadd.f32 %v55, 1e-05
      %v58 = vrsqrt.pop %v56
      %v59 = vmul.f32 %v58, %v56
      %v60 = vmul.f32 %v59, %v58
      %v61 = vmul.f32 0.5, %v60
      %v62 = vsub.f32 1.5, %v61
      %v63 = vmul.f32 %v58, %v62
      %vm64 = vweird.f32 %v56
      %vm65 = vweird.f32 %v58
      %vm66 = vmor %vm64, %vm65
      %v67 = vsel %vm66, %v58, %v63
      %v68 = vrsqrt.pop %v57
      %v69 = vmul.f32 %v68, %v57
      %v70 = vmul.f32 %v69, %v68
      %v71 = vmul.f32 0.5, %v70
      %v72 = vsub.f32 1.5, %v71
      %v73 = vmul.f32 %v68, %v72
      %vm74 = vweird.f32 %v57
      %vm75 = vweird.f32 %v68
      %vm76 = vmor %vm74, %vm75
      %v77 = vsel %vm76, %v68, %v73
      %v78 = vmul.f32 %v44, %v67
      %v79 = vmul.f32 %v45, %v77
      %v80 = vld [vmem:[%s1] sm:$0x1]
      %v82 = vperm.slane %v80, 0
      %v84 = vmul.f32 %v78, %v82
      %v85 = vmul.f32 %v79, %v82
      %v86 = vld [vmem:[%s2] sm:$0x1]
      %v88 = vperm.slane %v86, 0
      %v90 = vadd.f32 %v84, %v88
      %v91 = vadd.f32 %v85, %v88
      %v92 = vpack.c.bf16 %v90, %v90
      %v93 = vpack.c.bf16 %v91, %v91
      %vm94 = vcmask 257024
      %95 = vst.msk [vmem:[#allocation2] sm:$0xf] %vm94, %v92
      %96 = vst.msk [vmem:[#allocation2 + $0x4] sm:$0xf] %vm94, %v93
    $region25: #{prenorm.1} parent=1 // pred_fallthru
      _
    %v97 = vld [vmem:[#allocation2] sm:$0xf]
    %v98 = vld [vmem:[#allocation2 + $0x4] sm:$0xf]
    %v99 = vld [vmem:[%s3] sm:$0xf]
    %v100 = vld [vmem:[%s3 + $0x4] sm:$0xf]
    %v101 = vld [vmem:[%s3 + $0x8] sm:$0xf]
    %v102 = vld [vmem:[%s3 + $0xc] sm:$0xf]
    %v103 = vld [vmem:[%s4] sm:$0x1]
    %v105 = vperm.slane %v103, 0
    %v109 = vunpack.c.l.b16 %v97
    %v110 = vunpack.c.l.b16 %v98
    %v111 = vpack.c.b16 %v110, %v109
    %v116 = vunpack.c.l.b16 %v99
    %v117 = vunpack.c.l.b16 %v100
    %v118 = vunpack.c.l.b16 %v101
    %v119 = vunpack.c.l.b16 %v102
    %v120 = vpack.c.b16 %v117, %v116
    %v121 = vpack.c.b16 %v119, %v118
    %vm124 = vcmask 261120
    %v126 = vsel %vm124, %v111, 0
    %128 = vmatpush.bf16.msra.mxu0 0
    %129 = vmatpush.bf16.msra.mxu0 0
    %130 = vmatpush.bf16.msra.mxu0 0
    %131 = vmatpush.bf16.msra.mxu0 0
    %132 = vmatpush.bf16.msra.mxu0 0
    %133 = vmatpush.bf16.msra.mxu0 0
    %134 = vmatpush.bf16.msra.mxu0 %v121
    %135 = vmatpush.bf16.msra.mxu0 %v120
    %136 = vmatmul.bf16.gmra.mxu0 %v126
    %v137 = vpop.f32.mrf.mxu0
    %v138 = vadd.f32 %v105, %v137
    %v139 = vpop.f32.mrf.mxu0
    %v140 = vadd.f32 %v105, %v139
    %141 = vdwg.mxu0
    %142 = vst.msk [vmem:[#allocation3] sm:$0xff] %vm124, %v138
    %143 = vst.msk [vmem:[#allocation3 + $0x8] sm:$0xff] %vm124, %v140
    // Predicated region
    $region26: #{prenorm.1} parent=1 // pred_check
      _
    $region27: #{prenorm.1} parent=1 // pred_check_branch
      %145 = sbr.rel (0) target = $region29
    $region28: #{prenorm.1} parent=1 // pred_region
      %147 = vsyncadd [#allocation4], 0
      %s148 = sshll.u32 [#allocation3], 4
      %s149 = int_to_ptr.vmem [resolvable:$true] %s148
      %s150 = sshll.u32 %s5, 4
      %s151 = int_to_ptr.hbm [resolvable:$true] %s150
      %156 = dma.vmem_to_hbm [thread:$0]  %s149, 256, %s151, [#allocation4], 128, 128, 8
    $region29: #{prenorm.1} parent=1 // pred_fallthru
      _
    // Predicated region
    $region30: #{prenorm.1} parent=1 // pred_check
      _
    $region31: #{prenorm.1} parent=1 // pred_check_branch
      %158 = sbr.rel (0) target = $region33
    $region32: #{prenorm.1} parent=1 // pred_region
      %160 = dma.done [#allocation4], 256
    $region33: #{prenorm.1} parent=1 // pred_fallthru
      _
    %161 = vsyncpa [#allocation4], 1

</llo_original>
